<compile_context>
chip_gen: v7x
topology: tpu7x:2x2x1
jax: 0.10.0
libtpu: 0.0.40
codegen_flags: <defaults>
</compile_context>

<pallas_src>
import jax
import jax.numpy as jnp
from jax.experimental import pallas as pl
from jax.experimental.pallas import tpu as pltpu

PAD = 128                 # lane-dense padded width for every layer
NUM_LAYERS = 5
BN_EPS = 1e-5
LAYER_DIMS = [128, 64, 32, 16]     # fc1..fc4 output widths (fc5 -> num_classes)
FEAT_DIM = 16
FEAT_OFFSET = PAD - FEAT_DIM       # fc4 features live at lanes 112..127 of the slab


def _round_up(v, m):
    return -(-v // m) * m


def _mlp_kernel(x_ref, w_ref, b_ref, out_ref):
    """One batch tile of the whole folded MLP.

    x_ref   : (TB, 128)      bf16  input features zero-padded to 128 lanes
    w_ref   : (5, 128, 128)  bf16  per-layer weights (BN folded), zero-padded;
                                   fc4 output cols at lanes 112..127, fc5 input
                                   rows at 112..127, fc5 output cols at 0..nc-1
    b_ref   : (8, 128)       f32   per-layer biases (BN folded), rows 0..4 used
    out_ref : (TB, 128)      bf16  [logits @ lanes 0..nc-1 | features @ 112..127]
    """
    h = x_ref[...]                                             # bf16 (TB, 128)
    feat = None
    for l in range(4):                                         # fc+bn+relu x4
        z = jnp.dot(h, w_ref[l], preferred_element_type=jnp.float32)
        z = jnp.maximum(z + b_ref[l:l + 1, :], 0.0)            # f32 bias + ReLU
        h = z.astype(jnp.bfloat16)
        feat = z                                               # lanes 112..127 live
    # dropout(p=0.5) is identity in eval mode
    logits = jnp.dot(h, w_ref[4], preferred_element_type=jnp.float32) + b_ref[4:5, :]
    # Exact disjoint-lane merge: feat is zero on lanes 0..111, logits is zero on
    # lanes num_classes..127 (weights/bias were packed that way).
    out_ref[...] = (feat + logits).astype(jnp.bfloat16)


def _tile_batch(B, block_rows):
    grid_n = pl.cdiv(B, block_rows)
    if grid_n < 2 and B >= 256:        # v7x: >=2 steps so both TCs get work
        grid_n = 2
    tb = _round_up(pl.cdiv(B, grid_n), 16)   # bf16 sublane packing -> multiple of 16
    return grid_n, tb, grid_n * tb


def imu_classification_forward(x, packed_params, *, input_size, num_classes,
                               block_rows=1024):
    """x: (B, input_size) f32. packed_params: (w_slab, b_slab) from pack_params."""
    w_slab, b_slab = packed_params
    assert num_classes <= FEAT_OFFSET, "num_classes must fit below the feature lanes"
    B = x.shape[0]

    grid_n, tb, b_pad = _tile_batch(B, block_rows)

    # Single fused cast+pad (minimal batch padding, feature lanes zero-extended).
    x_pad = jnp.pad(x.astype(jnp.bfloat16),
                    ((0, b_pad - B), (0, PAD - input_size)))

    flops = 2 * b_pad * PAD * PAD * NUM_LAYERS
    bytes_accessed = (x_pad.size * 2 + w_slab.size * 2 + b_slab.size * 4
                      + b_pad * PAD * 2)

    out = pl.pallas_call(
        _mlp_kernel,
        out_shape=jax.ShapeDtypeStruct((b_pad, PAD), jnp.bfloat16),
        grid=(grid_n,),
        in_specs=[
            pl.BlockSpec((tb, PAD), lambda i: (i, 0)),                   # x tile
            pl.BlockSpec((NUM_LAYERS, PAD, PAD), lambda i: (0, 0, 0)),   # weights (resident)
            pl.BlockSpec((8, PAD), lambda i: (0, 0)),                    # biases  (resident)
        ],
        out_specs=pl.BlockSpec((tb, PAD), lambda i: (i, 0)),
        compiler_params=pltpu.CompilerParams(
            dimension_semantics=("parallel",)),
        cost_estimate=pl.CostEstimate(
            flops=flops, transcendentals=0, bytes_accessed=bytes_accessed),
    )(x_pad, w_slab, b_slab)

    out_f32 = out[:B].astype(jnp.float32)
    logits = out_f32[:, :num_classes]
    features = out_f32[:, FEAT_OFFSET:FEAT_OFFSET + FEAT_DIM]
    return logits, features


def init_params(key, input_size, num_classes):
    """Synthetic parameters with PyTorch layouts: Linear W (fout, fin), b (fout,);
    BatchNorm1d gamma/beta/running_mean/running_var (fout,)."""
    dims = [input_size] + LAYER_DIMS + [num_classes]
    params = {}
    keys = jax.random.split(key, 6 * NUM_LAYERS)
    k = 0
    for li in range(NUM_LAYERS):
        fin, fout = dims[li], dims[li + 1]
        bound = fin ** -0.5
        params[f"w{li + 1}"] = jax.random.uniform(
            keys[k], (fout, fin), jnp.float32, -bound, bound); k += 1
        params[f"b{li + 1}"] = jax.random.uniform(
            keys[k], (fout,), jnp.float32, -bound, bound); k += 1
        if li < 4:  # BatchNorm1d after fc1..fc4 (randomized so folding is exercised)
            params[f"gamma{li + 1}"] = jax.random.uniform(
                keys[k], (fout,), jnp.float32, 0.5, 1.5); k += 1
            params[f"beta{li + 1}"] = 0.1 * jax.random.normal(
                keys[k], (fout,), jnp.float32); k += 1
            params[f"mean{li + 1}"] = 0.1 * jax.random.normal(
                keys[k], (fout,), jnp.float32); k += 1
            params[f"var{li + 1}"] = jax.random.uniform(
                keys[k], (fout,), jnp.float32, 0.5, 1.5); k += 1
    return params


def pack_params(params, input_size, num_classes):
    """Fold BN (eval running stats) into the Linears and pack into lane-dense
    padded slabs.  fc4's 16 output features are placed at lanes 112..127 and fc5's
    logits at lanes 0..num_classes-1 so feat+logits merge into one 128-lane slab."""
    dims = [input_size] + LAYER_DIMS + [num_classes]
    # Lane offsets of each layer's real inputs / outputs inside the 128-lane slab.
    in_off = [0, 0, 0, 0, FEAT_OFFSET]     # fc5 reads features from lanes 112..127
    out_off = [0, 0, 0, FEAT_OFFSET, 0]    # fc4 writes its 16 features at 112..127
    w_slab = jnp.zeros((NUM_LAYERS, PAD, PAD), jnp.float32)
    b_slab = jnp.zeros((8, PAD), jnp.float32)
    for li in range(NUM_LAYERS):
        fin, fout = dims[li], dims[li + 1]
        w = params[f"w{li + 1}"].T                     # (fin, fout)
        b = params[f"b{li + 1}"]
        if li < 4:
            scale = params[f"gamma{li + 1}"] / jnp.sqrt(params[f"var{li + 1}"] + BN_EPS)
            shift = params[f"beta{li + 1}"] - params[f"mean{li + 1}"] * scale
            w = w * scale[None, :]
            b = b * scale + shift
        ri, ro = in_off[li], out_off[li]
        w_slab = w_slab.at[li, ri:ri + fin, ro:ro + fout].set(w)
        b_slab = b_slab.at[li, ro:ro + fout].set(b)
    return w_slab.astype(jnp.bfloat16), b_slab


def reference_forward_f32(x, params):
    """Plain-JAX f32 reference of the original PyTorch module (eval mode)."""
    h = x
    for li in range(1, 5):
        h = h @ params[f"w{li}"].T + params[f"b{li}"]
        scale = params[f"gamma{li}"] / jnp.sqrt(params[f"var{li}"] + BN_EPS)
        h = (h - params[f"mean{li}"]) * scale + params[f"beta{li}"]
        h = jnp.maximum(h, 0.0)
    feat = h
    logits = h @ params["w5"].T + params["b5"]
    return logits, feat


def reference_forward_bf16(x, w_slab, b_slab, input_size, num_classes):
    """Plain-JAX reference of the exact folded/packed bf16 computation the kernel runs."""
    h = jnp.pad(x.astype(jnp.bfloat16), ((0, 0), (0, PAD - input_size)))
    z = None
    for l in range(4):
        z = jnp.maximum(
            jnp.dot(h, w_slab[l], preferred_element_type=jnp.float32) + b_slab[l], 0.0)
        h = z.astype(jnp.bfloat16)
    feat = z[:, FEAT_OFFSET:FEAT_OFFSET + FEAT_DIM]
    logits = (jnp.dot(h, w_slab[4], preferred_element_type=jnp.float32)
              + b_slab[4])[:, :num_classes]
    # Mirror the kernel's bf16 output cast.
    return (logits.astype(jnp.bfloat16).astype(jnp.float32),
            feat.astype(jnp.bfloat16).astype(jnp.float32))


if __name__ == "__main__":
    input_size = 12   # e.g. IMU feature vector (acc/gyro stats)
    num_classes = 6
    batch = 8

    key = jax.random.PRNGKey(0)
    kx, kp, kx2 = jax.random.split(key, 3)
    x = jax.random.normal(kx, (batch, input_size), jnp.float32)
    params = init_params(kp, input_size, num_classes)
    packed = pack_params(params, input_size, num_classes)

    logits, features = imu_classification_forward(
        x, packed, input_size=input_size, num_classes=num_classes)
    logits = jax.block_until_ready(logits)
    features = jax.block_until_ready(features)

    assert logits.shape == (batch, num_classes)
    assert features.shape == (batch, FEAT_DIM)

    # Exact-path check vs. a plain-JAX reference of the same folded bf16 math.
    ref_l_bf16, ref_f_bf16 = reference_forward_bf16(
        x, packed[0], packed[1], input_size, num_classes)
    assert jnp.allclose(logits, ref_l_bf16, atol=1e-2, rtol=1e-2)
    assert jnp.allclose(features, ref_f_bf16, atol=1e-2, rtol=1e-2)

    # Semantics check vs. the f32 PyTorch-equivalent reference (bf16 tolerance).
    ref_l_f32, ref_f_f32 = reference_forward_f32(x, params)
    assert jnp.allclose(logits, ref_l_f32, atol=6e-2, rtol=6e-2)
    assert jnp.allclose(features, ref_f_f32, atol=6e-2, rtol=6e-2)

    # Exercise the right-sized multi-step grid path (B=300 -> grid=(2,), tb=160).
    x_big = jax.random.normal(kx2, (300, input_size), jnp.float32)
    l_big, f_big = imu_classification_forward(
        x_big, packed, input_size=input_size, num_classes=num_classes)
    l_big = jax.block_until_ready(l_big)
    assert l_big.shape == (300, num_classes) and f_big.shape == (300, FEAT_DIM)
    rl_big, rf_big = reference_forward_bf16(
        x_big, packed[0], packed[1], input_size, num_classes)
    assert jnp.allclose(l_big, rl_big, atol=1e-2, rtol=1e-2)
    assert jnp.allclose(f_big, rf_big, atol=1e-2, rtol=1e-2)

    print("KERNEL_OK")
</pallas_src>

<mosaic_0001>
module attributes {stable_mosaic.version = 11 : i64} {
  func.func @_mlp_kernel(%arg0: i32, %arg1: memref<16x128xbf16, #tpu.memory_space<vmem>>, %arg2: memref<5x128x128xbf16, #tpu.memory_space<vmem>>, %arg3: memref<8x128xf32, #tpu.memory_space<vmem>>, %arg4: memref<16x128xbf16, #tpu.memory_space<vmem>>) attributes {dimension_semantics = [#tpu.dimension_semantics<parallel>], iteration_bounds = array<i64: 1>, scalar_prefetch = 0 : i64, scratch_operands = 0 : i64, tpu.core_type = #tpu.core_type<tc>, window_params = [{transform_indices = @transform_0, window_bounds = array<i64: 16, 128>}, {pipeline_mode = #tpu.pipeline_mode<synchronous>, transform_indices = @transform_1, window_bounds = array<i64: 5, 128, 128>}, {pipeline_mode = #tpu.pipeline_mode<synchronous>, transform_indices = @transform_2, window_bounds = array<i64: 8, 128>}, {transform_indices = @transform_3, window_bounds = array<i64: 16, 128>}]} {
    %c0 = arith.constant 0 : index
    %c0_0 = arith.constant 0 : index
    %0 = vector.load %arg1[%c0, %c0_0] : memref<16x128xbf16, #tpu.memory_space<vmem>>, vector<16x128xbf16>
    %c0_1 = arith.constant 0 : index
    %c0_2 = arith.constant 0 : index
    %c0_3 = arith.constant 0 : index
    %1 = vector.load %arg2[%c0_1, %c0_2, %c0_3] : memref<5x128x128xbf16, #tpu.memory_space<vmem>>, vector<1x128x128xbf16>
    %2 = vector.shape_cast %1 : vector<1x128x128xbf16> to vector<128x128xbf16>
    %cst = arith.constant dense<0.000000e+00> : vector<16x128xf32>
    %3 = tpu.matmul %0, %2, %cst {dimension_numbers = #tpu.dot_dimension_numbers<[1], [0], [0], [1], [0, 0, 1, 1], [], []>} : vector<16x128xbf16>, vector<128x128xbf16>, vector<16x128xf32> -> vector<16x128xf32>
    %c0_4 = arith.constant 0 : index
    %c0_5 = arith.constant 0 : index
    %4 = vector.load %arg3[%c0_4, %c0_5] : memref<8x128xf32, #tpu.memory_space<vmem>>, vector<1x128xf32>
    %5 = vector.broadcast %4 : vector<1x128xf32> to vector<16x128xf32>
    %6 = arith.addf %3, %5 : vector<16x128xf32>
    %cst_6 = arith.constant 0.000000e+00 : f32
    %7 = vector.broadcast %cst_6 : f32 to vector<16x128xf32>
    %8 = arith.maximumf %6, %7 : vector<16x128xf32>
    %9 = arith.truncf %8 : vector<16x128xf32> to vector<16x128xbf16>
    %c1 = arith.constant 1 : index
    %c0_7 = arith.constant 0 : index
    %c0_8 = arith.constant 0 : index
    %10 = vector.load %arg2[%c1, %c0_7, %c0_8] : memref<5x128x128xbf16, #tpu.memory_space<vmem>>, vector<1x128x128xbf16>
    %11 = vector.shape_cast %10 : vector<1x128x128xbf16> to vector<128x128xbf16>
    %cst_9 = arith.constant dense<0.000000e+00> : vector<16x128xf32>
    %12 = tpu.matmul %9, %11, %cst_9 {dimension_numbers = #tpu.dot_dimension_numbers<[1], [0], [0], [1], [0, 0, 1, 1], [], []>} : vector<16x128xbf16>, vector<128x128xbf16>, vector<16x128xf32> -> vector<16x128xf32>
    %c1_10 = arith.constant 1 : index
    %c0_11 = arith.constant 0 : index
    %13 = vector.load %arg3[%c1_10, %c0_11] : memref<8x128xf32, #tpu.memory_space<vmem>>, vector<1x128xf32>
    %14 = vector.broadcast %13 : vector<1x128xf32> to vector<16x128xf32>
    %15 = arith.addf %12, %14 : vector<16x128xf32>
    %cst_12 = arith.constant 0.000000e+00 : f32
    %16 = vector.broadcast %cst_12 : f32 to vector<16x128xf32>
    %17 = arith.maximumf %15, %16 : vector<16x128xf32>
    %18 = arith.truncf %17 : vector<16x128xf32> to vector<16x128xbf16>
    %c2 = arith.constant 2 : index
    %c0_13 = arith.constant 0 : index
    %c0_14 = arith.constant 0 : index
    %19 = vector.load %arg2[%c2, %c0_13, %c0_14] : memref<5x128x128xbf16, #tpu.memory_space<vmem>>, vector<1x128x128xbf16>
    %20 = vector.shape_cast %19 : vector<1x128x128xbf16> to vector<128x128xbf16>
    %cst_15 = arith.constant dense<0.000000e+00> : vector<16x128xf32>
    %21 = tpu.matmul %18, %20, %cst_15 {dimension_numbers = #tpu.dot_dimension_numbers<[1], [0], [0], [1], [0, 0, 1, 1], [], []>} : vector<16x128xbf16>, vector<128x128xbf16>, vector<16x128xf32> -> vector<16x128xf32>
    %c2_16 = arith.constant 2 : index
    %c0_17 = arith.constant 0 : index
    %22 = vector.load %arg3[%c2_16, %c0_17] : memref<8x128xf32, #tpu.memory_space<vmem>>, vector<1x128xf32>
    %23 = vector.broadcast %22 : vector<1x128xf32> to vector<16x128xf32>
    %24 = arith.addf %21, %23 : vector<16x128xf32>
    %cst_18 = arith.constant 0.000000e+00 : f32
    %25 = vector.broadcast %cst_18 : f32 to vector<16x128xf32>
    %26 = arith.maximumf %24, %25 : vector<16x128xf32>
    %27 = arith.truncf %26 : vector<16x128xf32> to vector<16x128xbf16>
    %c3 = arith.constant 3 : index
    %c0_19 = arith.constant 0 : index
    %c0_20 = arith.constant 0 : index
    %28 = vector.load %arg2[%c3, %c0_19, %c0_20] : memref<5x128x128xbf16, #tpu.memory_space<vmem>>, vector<1x128x128xbf16>
    %29 = vector.shape_cast %28 : vector<1x128x128xbf16> to vector<128x128xbf16>
    %cst_21 = arith.constant dense<0.000000e+00> : vector<16x128xf32>
    %30 = tpu.matmul %27, %29, %cst_21 {dimension_numbers = #tpu.dot_dimension_numbers<[1], [0], [0], [1], [0, 0, 1, 1], [], []>} : vector<16x128xbf16>, vector<128x128xbf16>, vector<16x128xf32> -> vector<16x128xf32>
    %c3_22 = arith.constant 3 : index
    %c0_23 = arith.constant 0 : index
    %31 = vector.load %arg3[%c3_22, %c0_23] : memref<8x128xf32, #tpu.memory_space<vmem>>, vector<1x128xf32>
    %32 = vector.broadcast %31 : vector<1x128xf32> to vector<16x128xf32>
    %33 = arith.addf %30, %32 : vector<16x128xf32>
    %cst_24 = arith.constant 0.000000e+00 : f32
    %34 = vector.broadcast %cst_24 : f32 to vector<16x128xf32>
    %35 = arith.maximumf %33, %34 : vector<16x128xf32>
    %36 = arith.truncf %35 : vector<16x128xf32> to vector<16x128xbf16>
    %c4 = arith.constant 4 : index
    %c0_25 = arith.constant 0 : index
    %c0_26 = arith.constant 0 : index
    %37 = vector.load %arg2[%c4, %c0_25, %c0_26] : memref<5x128x128xbf16, #tpu.memory_space<vmem>>, vector<1x128x128xbf16>
    %38 = vector.shape_cast %37 : vector<1x128x128xbf16> to vector<128x128xbf16>
    %cst_27 = arith.constant dense<0.000000e+00> : vector<16x128xf32>
    %39 = tpu.matmul %36, %38, %cst_27 {dimension_numbers = #tpu.dot_dimension_numbers<[1], [0], [0], [1], [0, 0, 1, 1], [], []>} : vector<16x128xbf16>, vector<128x128xbf16>, vector<16x128xf32> -> vector<16x128xf32>
    %c4_28 = arith.constant 4 : index
    %c0_29 = arith.constant 0 : index
    %40 = vector.load %arg3[%c4_28, %c0_29] : memref<8x128xf32, #tpu.memory_space<vmem>>, vector<1x128xf32>
    %41 = vector.broadcast %40 : vector<1x128xf32> to vector<16x128xf32>
    %42 = arith.addf %39, %41 : vector<16x128xf32>
    %43 = arith.addf %35, %42 : vector<16x128xf32>
    %44 = arith.truncf %43 : vector<16x128xf32> to vector<16x128xbf16>
    %c0_30 = arith.constant 0 : index
    %c0_31 = arith.constant 0 : index
    %45 = vector.load %arg4[%c0_30, %c0_31] : memref<16x128xbf16, #tpu.memory_space<vmem>>, vector<16x128xbf16>
    tpu.vector_store %arg4[%c0_30, %c0_31], %44 {strides = array<i32>} : memref<16x128xbf16, #tpu.memory_space<vmem>>, vector<16x128xbf16>,
    return
  }
  func.func @transform_0(%arg0: i32) -> (i32, i32) {
    %c0_i32 = arith.constant 0 : i32
    %c0_i32_0 = arith.constant 0 : i32
    return %arg0, %c0_i32 : i32, i32
  }
  func.func @transform_1(%arg0: i32) -> (i32, i32, i32) {
    %c0_i32 = arith.constant 0 : i32
    %c0_i32_0 = arith.constant 0 : i32
    %c0_i32_1 = arith.constant 0 : i32
    %c0_i32_2 = arith.constant 0 : i32
    return %c0_i32, %c0_i32_0, %c0_i32_1 : i32, i32, i32
  }
  func.func @transform_2(%arg0: i32) -> (i32, i32) {
    %c0_i32 = arith.constant 0 : i32
    %c0_i32_0 = arith.constant 0 : i32
    %c0_i32_1 = arith.constant 0 : i32
    return %c0_i32, %c0_i32_0 : i32, i32
  }
  func.func @transform_3(%arg0: i32) -> (i32, i32) {
    %c0_i32 = arith.constant 0 : i32
    %c0_i32_0 = arith.constant 0 : i32
    return %arg0, %c0_i32 : i32, i32
  }
}

</mosaic_0001>

<llo_original>
// kernel: tpu_custom_call.1
$region0: #{tpu_custom_call.1}
  #allocation0 [shape = 'u32[]', space=smem, size = 0x4, offset = 0x4, fixed_abs, tag = 'smem constant byte address 0x4 - core index']
  #allocation1 [shape = 'u32[144,128]{1,0:T(1,128)}', space=vmem, size = 0x12000, scoped, tag = 'internal scratch']
  %s0 = inlined_call_operand.hbm [shape: bf16[16,128], index: 0, kind: input, shape index: {}]
  %s1 = inlined_call_operand.hbm [shape: bf16[5,128,128], index: 1, kind: input, shape index: {}]
  %s2 = inlined_call_operand.hbm [shape: f32[8,128], index: 2, kind: input, shape index: {}]
  %s3 = inlined_call_operand.hbm [shape: bf16[16,128], index: 3, kind: output, shape index: {}]
  %s4 = sld [smem:[#allocation0]]
  $region34: #{tpu_custom_call.1} parent=0
    _
  %s6 = ssub.s32 1, %s4
  %s7 = scalar_select 0, %s6, %s4
  $region1: #{tpu_custom_call.1} parent=0
    #allocation2 [shape = 'u8[4096]{0}', space=vmem, size = 0x1000, scoped, tag = 'input window, operand 0, single buffered']
    #allocation3 [shape = 's32[1]{0}', space=sflag, size = 0x4, scoped, tag = 'scoped memory for tpu_custom_call.1']
    #allocation4 [shape = 's32[1]{0}', space=sflag, size = 0x4, scoped, tag = 'scoped memory for tpu_custom_call.1']
    #allocation5 [shape = 'u8[163840]{0}', space=vmem, size = 0x28000, scoped, tag = 'input window, operand 1, single buffered']
    #allocation6 [shape = 's32[1]{0}', space=sflag, size = 0x4, scoped, tag = 'scoped memory for tpu_custom_call.1']
    #allocation7 [shape = 'u8[4096]{0}', space=vmem, size = 0x1000, scoped, tag = 'input window, operand 2, single buffered']
    #allocation8 [shape = 'u8[4096]{0}', space=vmem, size = 0x1000, scoped, tag = 'output window, operand 0, single buffered']
    %8 = vsyncpa [#allocation3], 0
    %9 = vsyncpa [#allocation6], 0
    %10 = vsyncpa [#allocation4], 0
    // Predicated region
    $region2: #{tpu_custom_call.1} parent=1 // pred_check
      _
    $region3: #{tpu_custom_call.1} parent=1 // pred_check_branch
      %12 = sbr.rel (0) target = $region5
    $region4: #{tpu_custom_call.1} parent=1 // pred_region
      %s14 = ssub.s32 128, 128
      %15 = vsyncadd [#allocation3], %s14
      %s16 = sshll.u32 [#allocation2], 4
      %s17 = int_to_ptr.vmem [resolvable:$true] %s16
      %22 = dma.hbm_to_vmem [thread:$0]  %s0, 128, %s17, [#allocation3], 64, 64, 4
    $region5: #{tpu_custom_call.1} parent=1 // pred_fallthru
      _
    // Predicated region
    $region6: #{tpu_custom_call.1} parent=1 // pred_check
      _
    $region7: #{tpu_custom_call.1} parent=1 // pred_check_branch
      %24 = sbr.rel (0) target = $region9
    $region8: #{tpu_custom_call.1} parent=1 // pred_region
      %s26 = ssub.s32 5120, 5120
      %27 = vsyncadd [#allocation6], %s26
      %s28 = sshll.u32 [#allocation5], 4
      %s29 = int_to_ptr.vmem [resolvable:$true] %s28
      %34 = dma.hbm_to_vmem [thread:$0]  %s1, 5120, %s29, [#allocation6], 64, 64, 4
    $region9: #{tpu_custom_call.1} parent=1 // pred_fallthru
      _
    // Predicated region
    $region10: #{tpu_custom_call.1} parent=1 // pred_check
      _
    $region11: #{tpu_custom_call.1} parent=1 // pred_check_branch
      %36 = sbr.rel (0) target = $region13
    $region12: #{tpu_custom_call.1} parent=1 // pred_region
      %s38 = ssub.s32 128, 128
      %39 = vsyncadd [#allocation6], %s38
      %s41 = sshll.u32 [#allocation7], 4
      %s42 = int_to_ptr.vmem [resolvable:$true] %s41
      %44 = dma.hbm_to_vmem [thread:$0]  %s2, 128, %s42, [#allocation6]
    $region13: #{tpu_custom_call.1} parent=1 // pred_fallthru
      _
    // Predicated region
    $region14: #{tpu_custom_call.1} parent=1 // pred_check
      _
    $region15: #{tpu_custom_call.1} parent=1 // pred_check_branch
      %46 = sbr.rel (0) target = $region17
    $region16: #{tpu_custom_call.1} parent=1 // pred_region
      %47 = dma.done [#allocation3], 128
    $region17: #{tpu_custom_call.1} parent=1 // pred_fallthru
      _
    // Predicated region
    $region18: #{tpu_custom_call.1} parent=1 // pred_check
      _
    $region19: #{tpu_custom_call.1} parent=1 // pred_check_branch
      %49 = sbr.rel (0) target = $region21
    $region20: #{tpu_custom_call.1} parent=1 // pred_region
      %50 = dma.done [#allocation6], 5120
    $region21: #{tpu_custom_call.1} parent=1 // pred_fallthru
      _
    // Predicated region
    $region22: #{tpu_custom_call.1} parent=1 // pred_check
      _
    $region23: #{tpu_custom_call.1} parent=1 // pred_check_branch
      %52 = sbr.rel (0) target = $region25
    $region24: #{tpu_custom_call.1} parent=1 // pred_region
      %53 = dma.done [#allocation6], 128
    $region25: #{tpu_custom_call.1} parent=1 // pred_fallthru
      _
    %v55 = vld [vmem:[#allocation2] sm:$0xf]
    %v56 = vld [vmem:[#allocation2 + $0x4] sm:$0xf]
    %v57 = vld [vmem:[#allocation5] sm:$0xf]
    %v58 = vld [vmem:[#allocation5 + $0x4] sm:$0xf]
    %v59 = vld [vmem:[#allocation5 + $0x8] sm:$0xf]
    %v60 = vld [vmem:[#allocation5 + $0xc] sm:$0xf]
    %v61 = vld [vmem:[#allocation5 + $0x10] sm:$0xf]
    %v62 = vld [vmem:[#allocation5 + $0x14] sm:$0xf]
    %v63 = vld [vmem:[#allocation5 + $0x18] sm:$0xf]
    %v64 = vld [vmem:[#allocation5 + $0x1c] sm:$0xf]
    %v65 = vld [vmem:[#allocation5 + $0x20] sm:$0xf]
    %v66 = vld [vmem:[#allocation5 + $0x24] sm:$0xf]
    %v67 = vld [vmem:[#allocation5 + $0x28] sm:$0xf]
    %v68 = vld [vmem:[#allocation5 + $0x2c] sm:$0xf]
    %v69 = vld [vmem:[#allocation5 + $0x30] sm:$0xf]
    %v70 = vld [vmem:[#allocation5 + $0x34] sm:$0xf]
    %v71 = vld [vmem:[#allocation5 + $0x38] sm:$0xf]
    %v72 = vld [vmem:[#allocation5 + $0x3c] sm:$0xf]
    %v73 = vld [vmem:[#allocation7] sm:$0x1]
    %v74 = vlaneseq
    %v75 = vshrl.u32 %v74, 7
    %v76 = vsub.s32 0, %v75
    %v77 = vrot.slane %v73, %v76
    %v80 = vunpack.c.l.b16 %v55
    %v81 = vunpack.c.l.b16 %v56
    %v82 = vpack.c.b16 %v81, %v80
    %v100 = vunpack.c.l.b16 %v57
    %v101 = vunpack.c.l.b16 %v58
    %v102 = vunpack.c.l.b16 %v59
    %v103 = vunpack.c.l.b16 %v60
    %v104 = vunpack.c.l.b16 %v61
    %v105 = vunpack.c.l.b16 %v62
    %v106 = vunpack.c.l.b16 %v63
    %v107 = vunpack.c.l.b16 %v64
    %v108 = vunpack.c.l.b16 %v65
    %v109 = vunpack.c.l.b16 %v66
    %v110 = vunpack.c.l.b16 %v67
    %v111 = vunpack.c.l.b16 %v68
    %v112 = vunpack.c.l.b16 %v69
    %v113 = vunpack.c.l.b16 %v70
    %v114 = vunpack.c.l.b16 %v71
    %v115 = vunpack.c.l.b16 %v72
    %v116 = vpack.c.b16 %v101, %v100
    %v117 = vpack.c.b16 %v103, %v102
    %v118 = vpack.c.b16 %v105, %v104
    %v119 = vpack.c.b16 %v107, %v106
    %v120 = vpack.c.b16 %v109, %v108
    %v121 = vpack.c.b16 %v111, %v110
    %v122 = vpack.c.b16 %v113, %v112
    %v123 = vpack.c.b16 %v115, %v114
    %132 = vmatprep.subr.bf16.mxu0 0
    %133 = vmatpush1.bf16.msra.mxu0 %v116
    %134 = vmatprep.subr.bf16.mxu0 0
    %135 = vmatpush1.bf16.msra.mxu0 %v117
    %136 = vmatprep.subr.bf16.mxu0 0
    %137 = vmatpush1.bf16.msra.mxu0 %v118
    %138 = vmatprep.subr.bf16.mxu0 0
    %139 = vmatpush1.bf16.msra.mxu0 %v119
    %140 = vmatprep.subr.bf16.mxu0 0
    %141 = vmatpush1.bf16.msra.mxu0 %v120
    %142 = vmatprep.subr.bf16.mxu0 0
    %143 = vmatpush1.bf16.msra.mxu0 %v121
    %144 = vmatprep.subr.bf16.mxu0 0
    %145 = vmatpush1.bf16.msra.mxu0 %v122
    %146 = vmatprep.subr.bf16.mxu0 0
    %147 = vmatpush1.bf16.msra.mxu0 %v123
    %148 = vmatprep.subr.bf16.mxu0 0
    %149 = vmatpush1.bf16.msra.mxu0 0
    %150 = vmatprep.subr.bf16.mxu0 0
    %151 = vmatpush1.bf16.msra.mxu0 0
    %152 = vmatprep.subr.bf16.mxu0 0
    %153 = vmatpush1.bf16.msra.mxu0 0
    %154 = vmatprep.subr.bf16.mxu0 0
    %155 = vmatpush1.bf16.msra.mxu0 0
    %156 = vmatprep.subr.bf16.mxu0 0
    %157 = vmatpush1.bf16.msra.mxu0 0
    %158 = vmatprep.subr.bf16.mxu0 0
    %159 = vmatpush1.bf16.msra.mxu0 0
    %160 = vmatprep.subr.bf16.mxu0 0
    %161 = vmatpush1.bf16.msra.mxu0 0
    %162 = vmatprep.subr.bf16.mxu0 0
    %163 = vmatpush1.bf16.msra.mxu0 0
    %164 = vmatprep.mubr.bf16.mxu0 0
    %165 = vmatmul.mubr.bf16.gmra.mrb[0].mxu0 %v82
    %v166 = vpop.f32.mrb[0].mxu0
    %v167 = vadd.f32 %v77, %v166
    %v168 = vpop.f32.mrb[0].mxu0
    %v169 = vpop.f32.mrb[0].mxu0
    %v170 = vadd.f32 %v77, %v169
    %v171 = vpop.f32.mrb[0].mxu0
    %172 = vdwg.mxu0
    %v173 = vmax.f32 %v167, 0.0
    %v174 = vmax.f32 %v170, 0.0
    %v175 = vpack.c.bf16 %v174, %v173
    %s176 = scalar_lea.vmem [#allocation5], 64
    %v177 = vld [vmem:[%s176] sm:$0xf]
    %v178 = vld [vmem:[%s176 + $0x4] sm:$0xf]
    %v179 = vld [vmem:[%s176 + $0x8] sm:$0xf]
    %v180 = vld [vmem:[%s176 + $0xc] sm:$0xf]
    %v181 = vld [vmem:[%s176 + $0x10] sm:$0xf]
    %v182 = vld [vmem:[%s176 + $0x14] sm:$0xf]
    %v183 = vld [vmem:[%s176 + $0x18] sm:$0xf]
    %v184 = vld [vmem:[%s176 + $0x1c] sm:$0xf]
    %v185 = vld [vmem:[%s176 + $0x20] sm:$0xf]
    %v186 = vld [vmem:[%s176 + $0x24] sm:$0xf]
    %v187 = vld [vmem:[%s176 + $0x28] sm:$0xf]
    %v188 = vld [vmem:[%s176 + $0x2c] sm:$0xf]
    %v189 = vld [vmem:[%s176 + $0x30] sm:$0xf]
    %v190 = vld [vmem:[%s176 + $0x34] sm:$0xf]
    %v191 = vld [vmem:[%s176 + $0x38] sm:$0xf]
    %v192 = vld [vmem:[%s176 + $0x3c] sm:$0xf]
    %v193 = vld [vmem:[#allocation7 + $0x1] sm:$0x1]
    %v194 = vlaneseq
    %v195 = vshrl.u32 %v194, 7
    %v196 = vsub.s32 0, %v195
    %v197 = vrot.slane %v193, %v196
    %v214 = vunpack.c.l.b16 %v177
    %v215 = vunpack.c.l.b16 %v178
    %v216 = vunpack.c.l.b16 %v179
    %v217 = vunpack.c.l.b16 %v180
    %v218 = vunpack.c.l.b16 %v181
    %v219 = vunpack.c.l.b16 %v182
    %v220 = vunpack.c.l.b16 %v183
    %v221 = vunpack.c.l.b16 %v184
    %v222 = vunpack.c.l.b16 %v185
    %v223 = vunpack.c.l.b16 %v186
    %v224 = vunpack.c.l.b16 %v187
    %v225 = vunpack.c.l.b16 %v188
    %v226 = vunpack.c.l.b16 %v189
    %v227 = vunpack.c.l.b16 %v190
    %v228 = vunpack.c.l.b16 %v191
    %v229 = vunpack.c.l.b16 %v192
    %v230 = vpack.c.b16 %v215, %v214
    %v231 = vpack.c.b16 %v217, %v216
    %v232 = vpack.c.b16 %v219, %v218
    %v233 = vpack.c.b16 %v221, %v220
    %v234 = vpack.c.b16 %v223, %v222
    %v235 = vpack.c.b16 %v225, %v224
    %v236 = vpack.c.b16 %v227, %v226
    %v237 = vpack.c.b16 %v229, %v228
    %246 = vmatprep.subr.bf16.mxu0 0
    %247 = vmatpush1.bf16.msra.mxu0 %v230
    %248 = vmatprep.subr.bf16.mxu0 0
    %249 = vmatpush1.bf16.msra.mxu0 %v231
    %250 = vmatprep.subr.bf16.mxu0 0
    %251 = vmatpush1.bf16.msra.mxu0 %v232
    %252 = vmatprep.subr.bf16.mxu0 0
    %253 = vmatpush1.bf16.msra.mxu0 %v233
    %254 = vmatprep.subr.bf16.mxu0 0
    %255 = vmatpush1.bf16.msra.mxu0 %v234
    %256 = vmatprep.subr.bf16.mxu0 0
    %257 = vmatpush1.bf16.msra.mxu0 %v235
    %258 = vmatprep.subr.bf16.mxu0 0
    %259 = vmatpush1.bf16.msra.mxu0 %v236
    %260 = vmatprep.subr.bf16.mxu0 0
    %261 = vmatpush1.bf16.msra.mxu0 %v237
    %262 = vmatprep.subr.bf16.mxu0 0
    %263 = vmatpush1.bf16.msra.mxu0 0
    %264 = vmatprep.subr.bf16.mxu0 0
    %265 = vmatpush1.bf16.msra.mxu0 0
    %266 = vmatprep.subr.bf16.mxu0 0
    %267 = vmatpush1.bf16.msra.mxu0 0
    %268 = vmatprep.subr.bf16.mxu0 0
    %269 = vmatpush1.bf16.msra.mxu0 0
    %270 = vmatprep.subr.bf16.mxu0 0
    %271 = vmatpush1.bf16.msra.mxu0 0
    %272 = vmatprep.subr.bf16.mxu0 0
    %273 = vmatpush1.bf16.msra.mxu0 0
    %274 = vmatprep.subr.bf16.mxu0 0
    %275 = vmatpush1.bf16.msra.mxu0 0
    %276 = vmatprep.subr.bf16.mxu0 0
    %277 = vmatpush1.bf16.msra.mxu0 0
    %278 = vmatprep.mubr.bf16.mxu0 0
    %279 = vmatmul.mubr.bf16.gmra.mrb[0].mxu0 %v175
    %v280 = vpop.f32.mrb[0].mxu0
    %v281 = vadd.f32 %v197, %v280
    %v282 = vpop.f32.mrb[0].mxu0
    %v283 = vpop.f32.mrb[0].mxu0
    %v284 = vadd.f32 %v197, %v283
    %v285 = vpop.f32.mrb[0].mxu0
    %286 = vdwg.mxu0
    %v287 = vmax.f32 %v281, 0.0
    %v288 = vmax.f32 %v284, 0.0
    %v289 = vpack.c.bf16 %v288, %v287
    %s290 = scalar_lea.vmem [#allocation5], 128
    %v291 = vld [vmem:[%s290] sm:$0xf]
    %v292 = vld [vmem:[%s290 + $0x4] sm:$0xf]
    %v293 = vld [vmem:[%s290 + $0x8] sm:$0xf]
    %v294 = vld [vmem:[%s290 + $0xc] sm:$0xf]
    %v295 = vld [vmem:[%s290 + $0x10] sm:$0xf]
    %v296 = vld [vmem:[%s290 + $0x14] sm:$0xf]
    %v297 = vld [vmem:[%s290 + $0x18] sm:$0xf]
    %v298 = vld [vmem:[%s290 + $0x1c] sm:$0xf]
    %v299 = vld [vmem:[%s290 + $0x20] sm:$0xf]
    %v300 = vld [vmem:[%s290 + $0x24] sm:$0xf]
    %v301 = vld [vmem:[%s290 + $0x28] sm:$0xf]
    %v302 = vld [vmem:[%s290 + $0x2c] sm:$0xf]
    %v303 = vld [vmem:[%s290 + $0x30] sm:$0xf]
    %v304 = vld [vmem:[%s290 + $0x34] sm:$0xf]
    %v305 = vld [vmem:[%s290 + $0x38] sm:$0xf]
    %v306 = vld [vmem:[%s290 + $0x3c] sm:$0xf]
    %v307 = vld [vmem:[#allocation7 + $0x2] sm:$0x1]
    %v308 = vlaneseq
    %v309 = vshrl.u32 %v308, 7
    %v310 = vsub.s32 0, %v309
    %v311 = vrot.slane %v307, %v310
    %v328 = vunpack.c.l.b16 %v291
    %v329 = vunpack.c.l.b16 %v292
    %v330 = vunpack.c.l.b16 %v293
    %v331 = vunpack.c.l.b16 %v294
    %v332 = vunpack.c.l.b16 %v295
    %v333 = vunpack.c.l.b16 %v296
    %v334 = vunpack.c.l.b16 %v297
    %v335 = vunpack.c.l.b16 %v298
    %v336 = vunpack.c.l.b16 %v299
    %v337 = vunpack.c.l.b16 %v300
    %v338 = vunpack.c.l.b16 %v301
    %v339 = vunpack.c.l.b16 %v302
    %v340 = vunpack.c.l.b16 %v303
    %v341 = vunpack.c.l.b16 %v304
    %v342 = vunpack.c.l.b16 %v305
    %v343 = vunpack.c.l.b16 %v306
    %v344 = vpack.c.b16 %v329, %v328
    %v345 = vpack.c.b16 %v331, %v330
    %v346 = vpack.c.b16 %v333, %v332
    %v347 = vpack.c.b16 %v335, %v334
    %v348 = vpack.c.b16 %v337, %v336
    %v349 = vpack.c.b16 %v339, %v338
    %v350 = vpack.c.b16 %v341, %v340
    %v351 = vpack.c.b16 %v343, %v342
    %360 = vmatprep.subr.bf16.mxu0 0
    %361 = vmatpush1.bf16.msra.mxu0 %v344
    %362 = vmatprep.subr.bf16.mxu0 0
    %363 = vmatpush1.bf16.msra.mxu0 %v345
    %364 = vmatprep.subr.bf16.mxu0 0
    %365 = vmatpush1.bf16.msra.mxu0 %v346
    %366 = vmatprep.subr.bf16.mxu0 0
    %367 = vmatpush1.bf16.msra.mxu0 %v347
    %368 = vmatprep.subr.bf16.mxu0 0
    %369 = vmatpush1.bf16.msra.mxu0 %v348
    %370 = vmatprep.subr.bf16.mxu0 0
    %371 = vmatpush1.bf16.msra.mxu0 %v349
    %372 = vmatprep.subr.bf16.mxu0 0
    %373 = vmatpush1.bf16.msra.mxu0 %v350
    %374 = vmatprep.subr.bf16.mxu0 0
    %375 = vmatpush1.bf16.msra.mxu0 %v351
    %376 = vmatprep.subr.bf16.mxu0 0
    %377 = vmatpush1.bf16.msra.mxu0 0
    %378 = vmatprep.subr.bf16.mxu0 0
    %379 = vmatpush1.bf16.msra.mxu0 0
    %380 = vmatprep.subr.bf16.mxu0 0
    %381 = vmatpush1.bf16.msra.mxu0 0
    %382 = vmatprep.subr.bf16.mxu0 0
    %383 = vmatpush1.bf16.msra.mxu0 0
    %384 = vmatprep.subr.bf16.mxu0 0
    %385 = vmatpush1.bf16.msra.mxu0 0
    %386 = vmatprep.subr.bf16.mxu0 0
    %387 = vmatpush1.bf16.msra.mxu0 0
    %388 = vmatprep.subr.bf16.mxu0 0
    %389 = vmatpush1.bf16.msra.mxu0 0
    %390 = vmatprep.subr.bf16.mxu0 0
    %391 = vmatpush1.bf16.msra.mxu0 0
    %392 = vmatprep.mubr.bf16.mxu0 0
    %393 = vmatmul.mubr.bf16.gmra.mrb[0].mxu0 %v289
    %v394 = vpop.f32.mrb[0].mxu0
    %v395 = vadd.f32 %v311, %v394
    %v396 = vpop.f32.mrb[0].mxu0
    %v397 = vpop.f32.mrb[0].mxu0
    %v398 = vadd.f32 %v311, %v397
    %v399 = vpop.f32.mrb[0].mxu0
    %400 = vdwg.mxu0
    %v401 = vmax.f32 %v395, 0.0
    %v402 = vmax.f32 %v398, 0.0
    %v403 = vpack.c.bf16 %v402, %v401
    %s404 = scalar_lea.vmem [#allocation5], 192
    %v405 = vld [vmem:[%s404] sm:$0xf]
    %v406 = vld [vmem:[%s404 + $0x4] sm:$0xf]
    %v407 = vld [vmem:[%s404 + $0x8] sm:$0xf]
    %v408 = vld [vmem:[%s404 + $0xc] sm:$0xf]
    %v409 = vld [vmem:[%s404 + $0x10] sm:$0xf]
    %v410 = vld [vmem:[%s404 + $0x14] sm:$0xf]
    %v411 = vld [vmem:[%s404 + $0x18] sm:$0xf]
    %v412 = vld [vmem:[%s404 + $0x1c] sm:$0xf]
    %v413 = vld [vmem:[%s404 + $0x20] sm:$0xf]
    %v414 = vld [vmem:[%s404 + $0x24] sm:$0xf]
    %v415 = vld [vmem:[%s404 + $0x28] sm:$0xf]
    %v416 = vld [vmem:[%s404 + $0x2c] sm:$0xf]
    %v417 = vld [vmem:[%s404 + $0x30] sm:$0xf]
    %v418 = vld [vmem:[%s404 + $0x34] sm:$0xf]
    %v419 = vld [vmem:[%s404 + $0x38] sm:$0xf]
    %v420 = vld [vmem:[%s404 + $0x3c] sm:$0xf]
    %v421 = vld [vmem:[#allocation7 + $0x3] sm:$0x1]
    %v422 = vlaneseq
    %v423 = vshrl.u32 %v422, 7
    %v424 = vsub.s32 0, %v423
    %v425 = vrot.slane %v421, %v424
    %v442 = vunpack.c.l.b16 %v405
    %v443 = vunpack.c.l.b16 %v406
    %v444 = vunpack.c.l.b16 %v407
    %v445 = vunpack.c.l.b16 %v408
    %v446 = vunpack.c.l.b16 %v409
    %v447 = vunpack.c.l.b16 %v410
    %v448 = vunpack.c.l.b16 %v411
    %v449 = vunpack.c.l.b16 %v412
    %v450 = vunpack.c.l.b16 %v413
    %v451 = vunpack.c.l.b16 %v414
    %v452 = vunpack.c.l.b16 %v415
    %v453 = vunpack.c.l.b16 %v416
    %v454 = vunpack.c.l.b16 %v417
    %v455 = vunpack.c.l.b16 %v418
    %v456 = vunpack.c.l.b16 %v419
    %v457 = vunpack.c.l.b16 %v420
    %v458 = vpack.c.b16 %v443, %v442
    %v459 = vpack.c.b16 %v445, %v444
    %v460 = vpack.c.b16 %v447, %v446
    %v461 = vpack.c.b16 %v449, %v448
    %v462 = vpack.c.b16 %v451, %v450
    %v463 = vpack.c.b16 %v453, %v452
    %v464 = vpack.c.b16 %v455, %v454
    %v465 = vpack.c.b16 %v457, %v456
    %474 = vmatprep.subr.bf16.mxu0 0
    %475 = vmatpush1.bf16.msra.mxu0 %v458
    %476 = vmatprep.subr.bf16.mxu0 0
    %477 = vmatpush1.bf16.msra.mxu0 %v459
    %478 = vmatprep.subr.bf16.mxu0 0
    %479 = vmatpush1.bf16.msra.mxu0 %v460
    %480 = vmatprep.subr.bf16.mxu0 0
    %481 = vmatpush1.bf16.msra.mxu0 %v461
    %482 = vmatprep.subr.bf16.mxu0 0
    %483 = vmatpush1.bf16.msra.mxu0 %v462
    %484 = vmatprep.subr.bf16.mxu0 0
    %485 = vmatpush1.bf16.msra.mxu0 %v463
    %486 = vmatprep.subr.bf16.mxu0 0
    %487 = vmatpush1.bf16.msra.mxu0 %v464
    %488 = vmatprep.subr.bf16.mxu0 0
    %489 = vmatpush1.bf16.msra.mxu0 %v465
    %490 = vmatprep.subr.bf16.mxu0 0
    %491 = vmatpush1.bf16.msra.mxu0 0
    %492 = vmatprep.subr.bf16.mxu0 0
    %493 = vmatpush1.bf16.msra.mxu0 0
    %494 = vmatprep.subr.bf16.mxu0 0
    %495 = vmatpush1.bf16.msra.mxu0 0
    %496 = vmatprep.subr.bf16.mxu0 0
    %497 = vmatpush1.bf16.msra.mxu0 0
    %498 = vmatprep.subr.bf16.mxu0 0
    %499 = vmatpush1.bf16.msra.mxu0 0
    %500 = vmatprep.subr.bf16.mxu0 0
    %501 = vmatpush1.bf16.msra.mxu0 0
    %502 = vmatprep.subr.bf16.mxu0 0
    %503 = vmatpush1.bf16.msra.mxu0 0
    %504 = vmatprep.subr.bf16.mxu0 0
    %505 = vmatpush1.bf16.msra.mxu0 0
    %506 = vmatprep.mubr.bf16.mxu0 0
    %507 = vmatmul.mubr.bf16.gmra.mrb[0].mxu0 %v403
    %v508 = vpop.f32.mrb[0].mxu0
    %v509 = vadd.f32 %v425, %v508
    %v510 = vpop.f32.mrb[0].mxu0
    %v511 = vpop.f32.mrb[0].mxu0
    %v512 = vadd.f32 %v425, %v511
    %v513 = vpop.f32.mrb[0].mxu0
    %514 = vdwg.mxu0
    %v515 = vmax.f32 %v509, 0.0
    %v516 = vmax.f32 %v512, 0.0
    %v517 = vpack.c.bf16 %v516, %v515
    %s518 = scalar_lea.vmem [#allocation5], 256
    %v519 = vld [vmem:[%s518] sm:$0xf]
    %v520 = vld [vmem:[%s518 + $0x4] sm:$0xf]
    %v521 = vld [vmem:[%s518 + $0x8] sm:$0xf]
    %v522 = vld [vmem:[%s518 + $0xc] sm:$0xf]
    %v523 = vld [vmem:[%s518 + $0x10] sm:$0xf]
    %v524 = vld [vmem:[%s518 + $0x14] sm:$0xf]
    %v525 = vld [vmem:[%s518 + $0x18] sm:$0xf]
    %v526 = vld [vmem:[%s518 + $0x1c] sm:$0xf]
    %v527 = vld [vmem:[%s518 + $0x20] sm:$0xf]
    %v528 = vld [vmem:[%s518 + $0x24] sm:$0xf]
    %v529 = vld [vmem:[%s518 + $0x28] sm:$0xf]
    %v530 = vld [vmem:[%s518 + $0x2c] sm:$0xf]
    %v531 = vld [vmem:[%s518 + $0x30] sm:$0xf]
    %v532 = vld [vmem:[%s518 + $0x34] sm:$0xf]
    %v533 = vld [vmem:[%s518 + $0x38] sm:$0xf]
    %v534 = vld [vmem:[%s518 + $0x3c] sm:$0xf]
    %v535 = vld [vmem:[#allocation7 + $0x4] sm:$0x1]
    %v536 = vlaneseq
    %v537 = vshrl.u32 %v536, 7
    %v538 = vsub.s32 0, %v537
    %v539 = vrot.slane %v535, %v538
    %v556 = vunpack.c.l.b16 %v519
    %v557 = vunpack.c.l.b16 %v520
    %v558 = vunpack.c.l.b16 %v521
    %v559 = vunpack.c.l.b16 %v522
    %v560 = vunpack.c.l.b16 %v523
    %v561 = vunpack.c.l.b16 %v524
    %v562 = vunpack.c.l.b16 %v525
    %v563 = vunpack.c.l.b16 %v526
    %v564 = vunpack.c.l.b16 %v527
    %v565 = vunpack.c.l.b16 %v528
    %v566 = vunpack.c.l.b16 %v529
    %v567 = vunpack.c.l.b16 %v530
    %v568 = vunpack.c.l.b16 %v531
    %v569 = vunpack.c.l.b16 %v532
    %v570 = vunpack.c.l.b16 %v533
    %v571 = vunpack.c.l.b16 %v534
    %v572 = vpack.c.b16 %v557, %v556
    %v573 = vpack.c.b16 %v559, %v558
    %v574 = vpack.c.b16 %v561, %v560
    %v575 = vpack.c.b16 %v563, %v562
    %v576 = vpack.c.b16 %v565, %v564
    %v577 = vpack.c.b16 %v567, %v566
    %v578 = vpack.c.b16 %v569, %v568
    %v579 = vpack.c.b16 %v571, %v570
    %588 = vmatprep.subr.bf16.mxu0 0
    %589 = vmatpush1.bf16.msra.mxu0 %v572
    %590 = vmatprep.subr.bf16.mxu0 0
    %591 = vmatpush1.bf16.msra.mxu0 %v573
    %592 = vmatprep.subr.bf16.mxu0 0
    %593 = vmatpush1.bf16.msra.mxu0 %v574
    %594 = vmatprep.subr.bf16.mxu0 0
    %595 = vmatpush1.bf16.msra.mxu0 %v575
    %596 = vmatprep.subr.bf16.mxu0 0
    %597 = vmatpush1.bf16.msra.mxu0 %v576
    %598 = vmatprep.subr.bf16.mxu0 0
    %599 = vmatpush1.bf16.msra.mxu0 %v577
    %600 = vmatprep.subr.bf16.mxu0 0
    %601 = vmatpush1.bf16.msra.mxu0 %v578
    %602 = vmatprep.subr.bf16.mxu0 0
    %603 = vmatpush1.bf16.msra.mxu0 %v579
    %604 = vmatprep.subr.bf16.mxu0 0
    %605 = vmatpush1.bf16.msra.mxu0 0
    %606 = vmatprep.subr.bf16.mxu0 0
    %607 = vmatpush1.bf16.msra.mxu0 0
    %608 = vmatprep.subr.bf16.mxu0 0
    %609 = vmatpush1.bf16.msra.mxu0 0
    %610 = vmatprep.subr.bf16.mxu0 0
    %611 = vmatpush1.bf16.msra.mxu0 0
    %612 = vmatprep.subr.bf16.mxu0 0
    %613 = vmatpush1.bf16.msra.mxu0 0
    %614 = vmatprep.subr.bf16.mxu0 0
    %615 = vmatpush1.bf16.msra.mxu0 0
    %616 = vmatprep.subr.bf16.mxu0 0
    %617 = vmatpush1.bf16.msra.mxu0 0
    %618 = vmatprep.subr.bf16.mxu0 0
    %619 = vmatpush1.bf16.msra.mxu0 0
    %620 = vmatprep.mubr.bf16.mxu0 0
    %621 = vmatmul.mubr.bf16.gmra.mrb[0].mxu0 %v517
    %v622 = vpop.f32.mrb[0].mxu0
    %v623 = vadd.f32 %v539, %v622
    %v624 = vpop.f32.mrb[0].mxu0
    %v625 = vpop.f32.mrb[0].mxu0
    %v626 = vadd.f32 %v539, %v625
    %v627 = vpop.f32.mrb[0].mxu0
    %628 = vdwg.mxu0
    %v629 = vadd.f32 %v515, %v623
    %v630 = vadd.f32 %v516, %v626
    %v631 = vpack.c.bf16 %v630, %v629
    %v633 = vunpack.c.l.b16 %v631
    %v634 = vunpack.c.h.b16 %v631
    %v635 = vpack.c.b16 %v633, %v633
    %v636 = vpack.c.b16 %v634, %v634
    %639 = vst [vmem:[#allocation8] sm:$0xf] %v635
    %640 = vst [vmem:[#allocation8 + $0x4] sm:$0xf] %v636
    // Predicated region
    $region26: #{tpu_custom_call.1} parent=1 // pred_check
      _
    $region27: #{tpu_custom_call.1} parent=1 // pred_check_branch
      %642 = sbr.rel (0) target = $region29
    $region28: #{tpu_custom_call.1} parent=1 // pred_region
      %s644 = ssub.s32 128, 128
      %645 = vsyncadd [#allocation4], %s644
      %s646 = sshll.u32 [#allocation8], 4
      %s647 = int_to_ptr.vmem [resolvable:$true] %s646
      %652 = dma.vmem_to_hbm [thread:$0]  %s647, 128, %s3, [#allocation4], 64, 64, 4
    $region29: #{tpu_custom_call.1} parent=1 // pred_fallthru
      _
    // Predicated region
    $region30: #{tpu_custom_call.1} parent=1 // pred_check
      _
    $region31: #{tpu_custom_call.1} parent=1 // pred_check_branch
      %654 = sbr.rel (0) target = $region33
    $region32: #{tpu_custom_call.1} parent=1 // pred_region
      %655 = dma.done [#allocation4], 128
    $region33: #{tpu_custom_call.1} parent=1 // pred_fallthru
      _
    %656 = vsyncpa [#allocation3], 1
    %657 = vsyncpa [#allocation6], 1
    %658 = vsyncpa [#allocation4], 1

</llo_original>
